<compile_context>
chip_gen: v6e
topology: v6e:2x2x1
jax: 0.10.0
libtpu: 0.0.40
codegen_flags: <defaults>
</compile_context>

<pallas_src>
import functools

import jax
import jax.numpy as jnp
from jax.experimental import pallas as pl
from jax.experimental.pallas import tpu as pltpu

BN_EPS = 1e-5  # nn.BatchNorm1d default eps


def _round_up(x, m):
    return (x + m - 1) // m * m


def linear_bn_kernel(x_ref, w_ref, g_ref, beta_ref, o_ref, *, true_m, pad_m):
    """One N-tile of BatchNorm1d(Linear(x)) with batch stats over rows.

    x_ref: (Mp, Kp) f32 or bf16 (resident across the N grid).
    w_ref: (Kp, TN) bf16.  g_ref/beta_ref: (1, TN) f32.  o_ref: (Mp, TN) f32.
    Rows >= true_m of x are zero padding (pad_m = Mp - true_m).
    """
    # bf16 MXU operands, f32 accumulation.  astype is a no-op when the wrapper
    # already supplied bf16 (padded path).
    xb = x_ref[...].astype(jnp.bfloat16)
    y = jnp.dot(xb, w_ref[...], preferred_element_type=jnp.float32)  # (Mp, TN)

    # Batch statistics (row-axis reductions on the VPU/XLU, not the MXU).
    # The Linear bias cancels exactly under batch-stat BN, so it is never
    # added; padded rows of y are therefore exactly zero and contribute
    # nothing to the column sum.
    inv_m = jnp.float32(1.0 / true_m)
    mean = jnp.sum(y, axis=0, keepdims=True) * inv_m          # (1, TN)

    c = y - mean                                              # centered (2nd pass: robust var)
    ss = jnp.sum(c * c, axis=0, keepdims=True)                # (1, TN)
    if pad_m:
        # Padded rows have c == -mean exactly; remove their contribution.
        ss = ss - jnp.float32(pad_m) * (mean * mean)
    var = jnp.maximum(ss * inv_m, 0.0)                        # biased variance (PyTorch BN)

    scale = g_ref[...] * jax.lax.rsqrt(var + jnp.float32(BN_EPS))
    o_ref[...] = c * scale + beta_ref[...]


def linear_bn(x, w, b, gamma, beta):
    """x: (M, nci) f32.  w: (nci, nco) (== torch Linear.weight.T).  b/gamma/beta: (nco,).

    Returns (M, nco) f32 = BatchNorm1d(Linear(x)) in training mode (batch stats).
    """
    del b  # Linear bias cancels exactly in the batch-stat BN output (see TODO above).

    M, K = x.shape
    K2, N = w.shape
    assert K == K2, (K, K2)
    assert M >= 1
    Mp = _round_up(M, 16)          # bf16 sublane tile is (16, 128)
    Kp = _round_up(K, 128)
    Np = _round_up(N, 128)
    TN = 256 if Np % 256 == 0 else 128   # 256 fills the v6e/v7x 256-wide MXU
    grid = (Np // TN,)

    # x: skip the wrapper pad/cast HBM round trip when already aligned.
    if Mp == M and Kp == K:
        xp = x                                             # f32, cast in VMEM
    else:
        xp = jnp.pad(x.astype(jnp.bfloat16), ((0, Mp - M), (0, Kp - K)))

    # Parameters are static per model: under jit these pads are folded / should
    # be hoisted out of the per-call path by the caller.
    wp = jnp.pad(w.astype(jnp.bfloat16), ((0, Kp - K), (0, Np - N)))
    gp = jnp.pad(gamma.astype(jnp.float32).reshape(1, N), ((0, 0), (0, Np - N)))
    betap = jnp.pad(beta.astype(jnp.float32).reshape(1, N), ((0, 0), (0, Np - N)))

    # VMEM budget: resident x (+ possible double buffer), double-buffered
    # per-tile W / params / out, plus the f32 epilogue temporaries (y, c, c*c)
    # and the in-VMEM bf16 cast of x.  Cap at 80% of physical capacity so the
    # limit is valid on v7x's 64 MiB parts.
    x_bytes = xp.size * xp.dtype.itemsize
    per_tile = Kp * TN * 2 + 2 * TN * 4 + Mp * TN * 4
    temps = 3 * Mp * TN * 4 + Mp * Kp * 2
    est = 2 * x_bytes + 2 * per_tile + temps + (2 << 20)
    try:
        cap = int(0.8 * pltpu.get_tpu_info().vmem_capacity_bytes)
    except Exception:
        cap = 48 << 20  # conservative: fits every generation incl. v7x (64 MiB)
    vmem_limit = int(min(max(est, 16 << 20), cap))

    cost = pl.CostEstimate(
        flops=2 * Mp * Kp * Np + 6 * Mp * Np,
        transcendentals=Np,
        bytes_accessed=x_bytes + wp.size * 2 + (gp.size + betap.size) * 4 + Mp * Np * 4,
    )

    out = pl.pallas_call(
        functools.partial(linear_bn_kernel, true_m=M, pad_m=Mp - M),
        out_shape=jax.ShapeDtypeStruct((Mp, Np), jnp.float32),
        grid=grid,
        in_specs=[
            pl.BlockSpec((Mp, Kp), lambda j: (0, 0)),   # x: resident across N tiles
            pl.BlockSpec((Kp, TN), lambda j: (0, j)),   # W tile
            pl.BlockSpec((1, TN), lambda j: (0, j)),    # gamma tile
            pl.BlockSpec((1, TN), lambda j: (0, j)),    # beta tile
        ],
        out_specs=pl.BlockSpec((Mp, TN), lambda j: (0, j)),
        compiler_params=pltpu.CompilerParams(
            dimension_semantics=("parallel",),          # shards N tiles across v7x's 2 TCs
            vmem_limit_bytes=vmem_limit,
        ),
        cost_estimate=cost,
    )(xp, wp, gp, betap)
    return out[:M, :N]


if __name__ == "__main__":
    def reference(x, w, b, gamma, beta):
        # Same bf16 quantization of the MXU operands, f32 everywhere else.
        xr = x.astype(jnp.bfloat16).astype(jnp.float32)
        wr = w.astype(jnp.bfloat16).astype(jnp.float32)
        y = jnp.dot(xr, wr, precision=jax.lax.Precision.HIGHEST) + b[None, :]
        mean = jnp.mean(y, axis=0, keepdims=True)
        var = jnp.mean((y - mean) ** 2, axis=0, keepdims=True)
        return (y - mean) * jax.lax.rsqrt(var + BN_EPS) * gamma[None, :] + beta[None, :]

    key = jax.random.PRNGKey(0)
    # First config exercises the pad+mask-correction path (M=8, K=32, N=16);
    # second exercises the aligned f32-x path and a multi-tile N grid.
    for (batch, nci, nco) in ((8, 32, 16), (32, 128, 384)):
        key, kx, kw, kb, kg, kbe = jax.random.split(key, 6)
        x = jax.random.normal(kx, (batch, nci), jnp.float32)
        w = jax.random.normal(kw, (nci, nco), jnp.float32) * 0.1   # == torch weight.T
        b = jax.random.normal(kb, (nco,), jnp.float32) * 0.1
        gamma = 1.0 + 0.1 * jax.random.normal(kg, (nco,), jnp.float32)
        beta = 0.1 * jax.random.normal(kbe, (nco,), jnp.float32)

        out = jax.block_until_ready(linear_bn(x, w, b, gamma, beta))
        assert out.shape == (batch, nco), out.shape
        assert bool(jnp.all(jnp.isfinite(out)))

        ref = reference(x, w, b, gamma, beta)
        err = float(jnp.max(jnp.abs(out - ref)))
        assert bool(jnp.allclose(out, ref, atol=2e-2, rtol=2e-2)), err

    print("KERNEL_OK")
</pallas_src>

<mosaic_0001>
module attributes {stable_mosaic.version = 11 : i64} {
  func.func @linear_bn_kernel(%arg0: i32, %arg1: memref<16x128xbf16, #tpu.memory_space<vmem>>, %arg2: memref<128x128xbf16, #tpu.memory_space<vmem>>, %arg3: memref<1x128xf32, #tpu.memory_space<vmem>>, %arg4: memref<1x128xf32, #tpu.memory_space<vmem>>, %arg5: memref<16x128xf32, #tpu.memory_space<vmem>>) attributes {dimension_semantics = [#tpu.dimension_semantics<parallel>], iteration_bounds = array<i64: 1>, scalar_prefetch = 0 : i64, scratch_operands = 0 : i64, tpu.core_type = #tpu.core_type<tc>, window_params = [{pipeline_mode = #tpu.pipeline_mode<synchronous>, transform_indices = @transform_0, window_bounds = array<i64: 16, 128>}, {transform_indices = @transform_1, window_bounds = array<i64: 128, 128>}, {transform_indices = @transform_2, window_bounds = array<i64: 1, 128>}, {transform_indices = @transform_3, window_bounds = array<i64: 1, 128>}, {transform_indices = @transform_4, window_bounds = array<i64: 16, 128>}]} {
    %c0 = arith.constant 0 : index
    %c0_0 = arith.constant 0 : index
    %0 = vector.load %arg1[%c0, %c0_0] : memref<16x128xbf16, #tpu.memory_space<vmem>>, vector<16x128xbf16>
    %c0_1 = arith.constant 0 : index
    %c0_2 = arith.constant 0 : index
    %1 = vector.load %arg2[%c0_1, %c0_2] : memref<128x128xbf16, #tpu.memory_space<vmem>>, vector<128x128xbf16>
    %cst = arith.constant dense<0.000000e+00> : vector<16x128xf32>
    %2 = tpu.matmul %0, %1, %cst {dimension_numbers = #tpu.dot_dimension_numbers<[1], [0], [0], [1], [0, 0, 1, 1], [], []>} : vector<16x128xbf16>, vector<128x128xbf16>, vector<16x128xf32> -> vector<16x128xf32>
    %cst_3 = arith.constant dense<0.000000e+00> : vector<128xf32>
    %3 = vector.multi_reduction <add>, %2, %cst_3 [0] : vector<16x128xf32> to vector<128xf32>
    %4 = vector.shape_cast %3 : vector<128xf32> to vector<1x128xf32>
    %cst_4 = arith.constant 1.250000e-01 : f32
    %5 = vector.broadcast %cst_4 : f32 to vector<1x128xf32>
    %6 = arith.mulf %4, %5 : vector<1x128xf32>
    %7 = vector.broadcast %6 : vector<1x128xf32> to vector<16x128xf32>
    %8 = arith.subf %2, %7 : vector<16x128xf32>
    %9 = arith.mulf %8, %8 : vector<16x128xf32>
    %cst_5 = arith.constant dense<0.000000e+00> : vector<128xf32>
    %10 = vector.multi_reduction <add>, %9, %cst_5 [0] : vector<16x128xf32> to vector<128xf32>
    %11 = vector.shape_cast %10 : vector<128xf32> to vector<1x128xf32>
    %12 = arith.mulf %6, %6 : vector<1x128xf32>
    %cst_6 = arith.constant 8.000000e+00 : f32
    %13 = vector.broadcast %cst_6 : f32 to vector<1x128xf32>
    %14 = arith.mulf %13, %12 : vector<1x128xf32>
    %15 = arith.subf %11, %14 : vector<1x128xf32>
    %cst_7 = arith.constant 1.250000e-01 : f32
    %16 = vector.broadcast %cst_7 : f32 to vector<1x128xf32>
    %17 = arith.mulf %15, %16 : vector<1x128xf32>
    %cst_8 = arith.constant 0.000000e+00 : f32
    %18 = vector.broadcast %cst_8 : f32 to vector<1x128xf32>
    %19 = arith.maximumf %17, %18 : vector<1x128xf32>
    %c0_9 = arith.constant 0 : index
    %c0_10 = arith.constant 0 : index
    %20 = vector.load %arg3[%c0_9, %c0_10] : memref<1x128xf32, #tpu.memory_space<vmem>>, vector<1x128xf32>
    %cst_11 = arith.constant 9.99999974E-6 : f32
    %21 = vector.broadcast %cst_11 : f32 to vector<1x128xf32>
    %22 = arith.addf %19, %21 : vector<1x128xf32>
    %23 = math.rsqrt %22 : vector<1x128xf32>
    %24 = arith.mulf %20, %23 : vector<1x128xf32>
    %25 = vector.broadcast %24 : vector<1x128xf32> to vector<16x128xf32>
    %26 = arith.mulf %8, %25 : vector<16x128xf32>
    %c0_12 = arith.constant 0 : index
    %c0_13 = arith.constant 0 : index
    %27 = vector.load %arg4[%c0_12, %c0_13] : memref<1x128xf32, #tpu.memory_space<vmem>>, vector<1x128xf32>
    %28 = vector.broadcast %27 : vector<1x128xf32> to vector<16x128xf32>
    %29 = arith.addf %26, %28 : vector<16x128xf32>
    %c0_14 = arith.constant 0 : index
    %c0_15 = arith.constant 0 : index
    %30 = vector.load %arg5[%c0_14, %c0_15] : memref<16x128xf32, #tpu.memory_space<vmem>>, vector<16x128xf32>
    tpu.vector_store %arg5[%c0_14, %c0_15], %29 {strides = array<i32>} : memref<16x128xf32, #tpu.memory_space<vmem>>, vector<16x128xf32>,
    return
  }
  func.func @transform_0(%arg0: i32) -> (i32, i32) {
    %c0_i32 = arith.constant 0 : i32
    %c0_i32_0 = arith.constant 0 : i32
    %c0_i32_1 = arith.constant 0 : i32
    return %c0_i32, %c0_i32_0 : i32, i32
  }
  func.func @transform_1(%arg0: i32) -> (i32, i32) {
    %c0_i32 = arith.constant 0 : i32
    %c0_i32_0 = arith.constant 0 : i32
    return %c0_i32, %arg0 : i32, i32
  }
  func.func @transform_2(%arg0: i32) -> (i32, i32) {
    %c0_i32 = arith.constant 0 : i32
    %c0_i32_0 = arith.constant 0 : i32
    return %c0_i32, %arg0 : i32, i32
  }
  func.func @transform_3(%arg0: i32) -> (i32, i32) {
    %c0_i32 = arith.constant 0 : i32
    %c0_i32_0 = arith.constant 0 : i32
    return %c0_i32, %arg0 : i32, i32
  }
  func.func @transform_4(%arg0: i32) -> (i32, i32) {
    %c0_i32 = arith.constant 0 : i32
    %c0_i32_0 = arith.constant 0 : i32
    return %c0_i32, %arg0 : i32, i32
  }
}

</mosaic_0001>

<llo_original>
// kernel: tpu_custom_call.1
$region0: #{tpu_custom_call.1}
  #allocation0 [shape = 'u32[]', space=smem, size = 0x4, offset = 0x4, fixed_abs, tag = 'smem constant byte address 0x4 - core index']
  #allocation1 [shape = 'u32[144,128]{1,0:T(1,128)}', space=vmem, size = 0x12000, scoped, tag = 'internal scratch']
  %s0 = inlined_call_operand.hbm [shape: bf16[16,128], index: 0, kind: input, shape index: {}]
  %s1 = inlined_call_operand.hbm [shape: bf16[128,128], index: 1, kind: input, shape index: {}]
  %s2 = inlined_call_operand.vmem [shape: f32[1,128], index: 2, kind: input, shape index: {}]
  %s3 = inlined_call_operand.vmem [shape: f32[1,128], index: 3, kind: input, shape index: {}]
  %s4 = inlined_call_operand.hbm [shape: f32[16,128], index: 4, kind: output, shape index: {}]
  %s5 = sld [smem:[#allocation0]]
  $region34: #{tpu_custom_call.1} parent=0
    _
  %s7 = ssub.s32 1, %s5
  %s8 = scalar_select 0, %s7, %s5
  $region1: #{tpu_custom_call.1} parent=0
    #allocation2 [shape = 'u8[4096]{0}', space=vmem, size = 0x1000, scoped, tag = 'input window, operand 0, single buffered']
    #allocation3 [shape = 's32[1]{0}', space=sflag, size = 0x4, scoped, tag = 'scoped memory for tpu_custom_call.1']
    #allocation4 [shape = 's32[1]{0}', space=sflag, size = 0x4, scoped, tag = 'scoped memory for tpu_custom_call.1']
    #allocation5 [shape = 'u8[32768]{0}', space=vmem, size = 0x8000, scoped, tag = 'input window, operand 1, single buffered']
    #allocation6 [shape = 's32[1]{0}', space=sflag, size = 0x4, scoped, tag = 'scoped memory for tpu_custom_call.1']
    #allocation7 [shape = 'u8[8192]{0}', space=vmem, size = 0x2000, scoped, tag = 'output window, operand 0, single buffered']
    %9 = vsyncpa [#allocation3], 0
    %10 = vsyncpa [#allocation6], 0
    %11 = vsyncpa [#allocation4], 0
    // Predicated region
    $region2: #{tpu_custom_call.1} parent=1 // pred_check
      _
    $region3: #{tpu_custom_call.1} parent=1 // pred_check_branch
      %13 = sbr.rel (0) target = $region5
    $region4: #{tpu_custom_call.1} parent=1 // pred_region
      %s15 = ssub.s32 128, 128
      %16 = vsyncadd [#allocation3], %s15
      %s17 = sshll.u32 [#allocation2], 4
      %s18 = int_to_ptr.vmem [resolvable:$true] %s17
      %23 = dma.hbm_to_vmem [thread:$0]  %s0, 128, %s18, [#allocation3], 64, 64, 4
    $region5: #{tpu_custom_call.1} parent=1 // pred_fallthru
      _
    // Predicated region
    $region6: #{tpu_custom_call.1} parent=1 // pred_check
      _
    $region7: #{tpu_custom_call.1} parent=1 // pred_check_branch
      %25 = sbr.rel (0) target = $region9
    $region8: #{tpu_custom_call.1} parent=1 // pred_region
      %s27 = ssub.s32 1024, 1024
      %28 = vsyncadd [#allocation6], %s27
      %s29 = sshll.u32 [#allocation5], 4
      %s30 = int_to_ptr.vmem [resolvable:$true] %s29
      %35 = dma.hbm_to_vmem [thread:$0]  %s1, 1024, %s30, [#allocation6], 64, 64, 4
    $region9: #{tpu_custom_call.1} parent=1 // pred_fallthru
      _
    // Predicated region
    $region10: #{tpu_custom_call.1} parent=1 // pred_check
      _
    $region11: #{tpu_custom_call.1} parent=1 // pred_check_branch
      %37 = sbr.rel (0) target = $region13
    $region12: #{tpu_custom_call.1} parent=1 // pred_region
      _
    $region13: #{tpu_custom_call.1} parent=1 // pred_fallthru
      _
    // Predicated region
    $region14: #{tpu_custom_call.1} parent=1 // pred_check
      _
    $region15: #{tpu_custom_call.1} parent=1 // pred_check_branch
      %39 = sbr.rel (0) target = $region17
    $region16: #{tpu_custom_call.1} parent=1 // pred_region
      _
    $region17: #{tpu_custom_call.1} parent=1 // pred_fallthru
      _
    // Predicated region
    $region18: #{tpu_custom_call.1} parent=1 // pred_check
      _
    $region19: #{tpu_custom_call.1} parent=1 // pred_check_branch
      %41 = sbr.rel (0) target = $region21
    $region20: #{tpu_custom_call.1} parent=1 // pred_region
      %42 = dma.done [#allocation3], 128
    $region21: #{tpu_custom_call.1} parent=1 // pred_fallthru
      _
    // Predicated region
    $region22: #{tpu_custom_call.1} parent=1 // pred_check
      _
    $region23: #{tpu_custom_call.1} parent=1 // pred_check_branch
      %44 = sbr.rel (0) target = $region25
    $region24: #{tpu_custom_call.1} parent=1 // pred_region
      %45 = dma.done [#allocation6], 1024
    $region25: #{tpu_custom_call.1} parent=1 // pred_fallthru
      _
    %v47 = vld [vmem:[#allocation2] sm:$0xf]
    %v48 = vld [vmem:[#allocation2 + $0x4] sm:$0xf]
    %v49 = vld [vmem:[#allocation5] sm:$0xf]
    %v50 = vld [vmem:[#allocation5 + $0x4] sm:$0xf]
    %v51 = vld [vmem:[#allocation5 + $0x8] sm:$0xf]
    %v52 = vld [vmem:[#allocation5 + $0xc] sm:$0xf]
    %v53 = vld [vmem:[#allocation5 + $0x10] sm:$0xf]
    %v54 = vld [vmem:[#allocation5 + $0x14] sm:$0xf]
    %v55 = vld [vmem:[#allocation5 + $0x18] sm:$0xf]
    %v56 = vld [vmem:[#allocation5 + $0x1c] sm:$0xf]
    %v57 = vld [vmem:[#allocation5 + $0x20] sm:$0xf]
    %v58 = vld [vmem:[#allocation5 + $0x24] sm:$0xf]
    %v59 = vld [vmem:[#allocation5 + $0x28] sm:$0xf]
    %v60 = vld [vmem:[#allocation5 + $0x2c] sm:$0xf]
    %v61 = vld [vmem:[#allocation5 + $0x30] sm:$0xf]
    %v62 = vld [vmem:[#allocation5 + $0x34] sm:$0xf]
    %v63 = vld [vmem:[#allocation5 + $0x38] sm:$0xf]
    %v64 = vld [vmem:[#allocation5 + $0x3c] sm:$0xf]
    %v67 = vunpack.c.l.b16 %v47
    %v68 = vunpack.c.l.b16 %v48
    %v69 = vpack.c.b16 %v68, %v67
    %v87 = vunpack.c.l.b16 %v49
    %v88 = vunpack.c.l.b16 %v50
    %v89 = vunpack.c.l.b16 %v51
    %v90 = vunpack.c.l.b16 %v52
    %v91 = vunpack.c.l.b16 %v53
    %v92 = vunpack.c.l.b16 %v54
    %v93 = vunpack.c.l.b16 %v55
    %v94 = vunpack.c.l.b16 %v56
    %v95 = vunpack.c.l.b16 %v57
    %v96 = vunpack.c.l.b16 %v58
    %v97 = vunpack.c.l.b16 %v59
    %v98 = vunpack.c.l.b16 %v60
    %v99 = vunpack.c.l.b16 %v61
    %v100 = vunpack.c.l.b16 %v62
    %v101 = vunpack.c.l.b16 %v63
    %v102 = vunpack.c.l.b16 %v64
    %v103 = vpack.c.b16 %v88, %v87
    %v104 = vpack.c.b16 %v90, %v89
    %v105 = vpack.c.b16 %v92, %v91
    %v106 = vpack.c.b16 %v94, %v93
    %v107 = vpack.c.b16 %v96, %v95
    %v108 = vpack.c.b16 %v98, %v97
    %v109 = vpack.c.b16 %v100, %v99
    %v110 = vpack.c.b16 %v102, %v101
    %119 = vmatprep.subr.bf16.mxu0 0
    %120 = vmatpush1.bf16.msra.mxu0 %v110
    %121 = vmatprep.subr.bf16.mxu0 0
    %122 = vmatpush1.bf16.msra.mxu0 %v109
    %123 = vmatprep.subr.bf16.mxu0 0
    %124 = vmatpush1.bf16.msra.mxu0 %v108
    %125 = vmatprep.subr.bf16.mxu0 0
    %126 = vmatpush1.bf16.msra.mxu0 %v107
    %127 = vmatprep.subr.bf16.mxu0 0
    %128 = vmatpush1.bf16.msra.mxu0 %v106
    %129 = vmatprep.subr.bf16.mxu0 0
    %130 = vmatpush1.bf16.msra.mxu0 %v105
    %131 = vmatprep.subr.bf16.mxu0 0
    %132 = vmatpush1.bf16.msra.mxu0 %v104
    %133 = vmatprep.subr.bf16.mxu0 0
    %134 = vmatpush1.bf16.msra.mxu0 %v103
    %135 = vmatprep.subr.bf16.mxu0 0
    %136 = vmatpush2.bf16.msra.mxu0 0
    %137 = vmatprep.subr.bf16.mxu0 0
    %138 = vmatpush2.bf16.msra.mxu0 0
    %139 = vmatprep.subr.bf16.mxu0 0
    %140 = vmatpush2.bf16.msra.mxu0 0
    %141 = vmatprep.subr.bf16.mxu0 0
    %142 = vmatpush2.bf16.msra.mxu0 0
    %143 = vmatprep.subr.bf16.mxu0 0
    %144 = vmatpush2.bf16.msra.mxu0 0
    %145 = vmatprep.subr.bf16.mxu0 0
    %146 = vmatpush2.bf16.msra.mxu0 0
    %147 = vmatprep.subr.bf16.mxu0 0
    %148 = vmatpush2.bf16.msra.mxu0 0
    %149 = vmatprep.subr.bf16.mxu0 0
    %150 = vmatpush2.bf16.msra.mxu0 0
    %151 = vmatprep.mubr.bf16.mxu0 0
    %152 = vmatmul.mubr.bf16.gmra.mxu0 %v69
    %v153 = vpop.f32.mrf.mxu0
    %v154 = vadd.f32 0.0, %v153
    %v155 = vpop.f32.mrf.mxu0
    %v156 = vpop.f32.mrf.mxu0
    %v157 = vadd.f32 0.0, %v156
    %v158 = vpop.f32.mrf.mxu0
    %159 = vdwg.mxu0
    %v160 = vadd.f32 %v154, %v157
    %v161 = vrot.slane %v160, 4
    %v162 = vadd.f32 %v160, %v161
    %v163 = vrot.slane %v162, 2
    %v164 = vadd.f32 %v162, %v163
    %v165 = vrot.slane %v164, 1
    %v166 = vadd.f32 %v164, %v165
    %v167 = vmul.f32 %v166, 0.125
    %v168 = vsub.f32 %v154, %v167
    %v169 = vsub.f32 %v157, %v167
    %v170 = vmul.f32 %v168, %v168
    %v171 = vmul.f32 %v169, %v169
    %v172 = vadd.f32 %v170, %v171
    %v173 = vrot.slane %v172, 4
    %v174 = vadd.f32 %v172, %v173
    %v175 = vrot.slane %v174, 2
    %v176 = vadd.f32 %v174, %v175
    %v177 = vrot.slane %v176, 1
    %v178 = vadd.f32 %v176, %v177
    %v179 = vmul.f32 %v167, %v167
    %v180 = vmul.f32 %v179, 8.0
    %v181 = vsub.f32 %v178, %v180
    %v182 = vmul.f32 %v181, 0.125
    %v183 = vmax.f32 %v182, 0.0
    %v184 = vld [vmem:[%s2] sm:$0x1]
    %v185 = vadd.f32 %v183, 1e-05
    %v186 = vrsqrt.pop %v185
    %v187 = vmul.f32 %v184, %v186
    %v189 = vlaneseq
    %v190 = vshrl.u32 %v189, 7
    %v191 = vsub.s32 0, %v190
    %v192 = vrot.slane %v187, %v191
    %v194 = vmul.f32 %v168, %v192
    %v195 = vmul.f32 %v169, %v192
    %v196 = vld [vmem:[%s3] sm:$0x1]
    %v198 = vlaneseq
    %v199 = vshrl.u32 %v198, 7
    %v200 = vsub.s32 0, %v199
    %v201 = vrot.slane %v196, %v200
    %v203 = vadd.f32 %v194, %v201
    %v204 = vadd.f32 %v195, %v201
    %205 = vst [vmem:[#allocation7] sm:$0xff] %v203
    %206 = vst [vmem:[#allocation7 + $0x8] sm:$0xff] %v204
    // Predicated region
    $region26: #{tpu_custom_call.1} parent=1 // pred_check
      _
    $region27: #{tpu_custom_call.1} parent=1 // pred_check_branch
      %208 = sbr.rel (0) target = $region29
    $region28: #{tpu_custom_call.1} parent=1 // pred_region
      %s210 = ssub.s32 256, 256
      %211 = vsyncadd [#allocation4], %s210
      %s212 = sshll.u32 [#allocation7], 4
      %s213 = int_to_ptr.vmem [resolvable:$true] %s212
      %218 = dma.vmem_to_hbm [thread:$0]  %s213, 256, %s4, [#allocation4], 128, 128, 8
    $region29: #{tpu_custom_call.1} parent=1 // pred_fallthru
      _
    // Predicated region
    $region30: #{tpu_custom_call.1} parent=1 // pred_check
      _
    $region31: #{tpu_custom_call.1} parent=1 // pred_check_branch
      %220 = sbr.rel (0) target = $region33
    $region32: #{tpu_custom_call.1} parent=1 // pred_region
      %221 = dma.done [#allocation4], 256
    $region33: #{tpu_custom_call.1} parent=1 // pred_fallthru
      _
    %222 = vsyncpa [#allocation3], 1
    %223 = vsyncpa [#allocation6], 1
    %224 = vsyncpa [#allocation4], 1

</llo_original>
